<compile_context>
chip_gen: v7x
topology: tpu7x:2x2x1
jax: 0.10.0
libtpu: 0.0.40
codegen_flags: <defaults>
</compile_context>

<pallas_src>
import math

import jax
import jax.numpy as jnp
from jax.experimental import pallas as pl
from jax.experimental.pallas import tpu as pltpu


def _swap01_copy_kernel(x_ref, o_ref):
    # The grid/index_map already performs the (T, B) -> (B, T) swap; the body
    # is a straight VMEM slab copy for one (batch, row-chunk) block.
    o_ref[...] = x_ref[...]


def _pick_inner_shape(S: int, max_lanes: int = 4096):
    """Factor S = R * L with L a multiple of 128 (lane-dense) and, if possible,
    R a multiple of 8 (sublane-dense).  Fallback (1, S) is always a legal block
    because it equals the full array dims."""
    candidates = [l for l in range(128, min(S, max_lanes) + 1, 128) if S % l == 0]
    for lanes in sorted(candidates, reverse=True):
        if (S // lanes) % 8 == 0:
            return S // lanes, lanes
    if candidates:
        lanes = max(candidates)
        return S // lanes, lanes
    return 1, S


def _pick_row_chunk(T, R, L, itemsize, budget_bytes=2 * 1024 * 1024):
    """Rows per grid step.  Only chunk when the chunked block stays
    (8, 128)-legal (R % 8 == 0 and L % 128 == 0); otherwise copy the whole
    (T, R, L) slab (block == full dims, always legal)."""
    if T * R * L * itemsize <= budget_bytes or R % 8 != 0 or L % 128 != 0:
        return R
    best = 8
    for rb in range(8, R + 1, 8):
        if R % rb == 0 and T * rb * L * itemsize <= budget_bytes:
            best = rb
    return best


def ssbh_dim_changer_one_two(x: jax.Array) -> jax.Array:
    """Pallas equivalent of SSBH_DimChanger_one_two.forward: swap dims 0 and 1."""
    assert x.ndim >= 2, "module swaps dim 0 and dim 1; needs at least 2 dims"
    T, B, *rest = x.shape
    S = int(math.prod(rest)) if rest else 1

    # Lane/sublane-dense inner factorization of the trailing dims.
    R, L = _pick_inner_shape(S)
    x4 = x.reshape(T, B, R, L)  # metadata-only: collapses contiguous trailing dims

    Rb = _pick_row_chunk(T, R, L, x.dtype.itemsize)
    n_r = R // Rb

    out4 = pl.pallas_call(
        _swap01_copy_kernel,
        out_shape=jax.ShapeDtypeStruct((B, T, R, L), x.dtype),
        grid=(B, n_r),
        in_specs=[
            pl.BlockSpec(
                (T, pl.Squeezed(), Rb, L),      # full T per step, one batch index
                lambda b, r: (0, b, r, 0),
            )
        ],
        out_specs=pl.BlockSpec(
            (pl.Squeezed(), T, Rb, L),          # one big contiguous (T, Rb, L) write
            lambda b, r: (b, 0, r, 0),
        ),
        compiler_params=pltpu.CompilerParams(
            dimension_semantics=("parallel", "parallel"),
        ),
    )(x4)

    return out4.reshape(B, T, *rest)


if __name__ == "__main__":
    # (TIME, batch, C, H, W) as the SNN autoencoder feeds this module.
    T, B, C, H, W = 2, 2, 4, 16, 16

    key = jax.random.PRNGKey(0)
    x = jax.random.normal(key, (T, B, C, H, W), dtype=jnp.float32)

    y = ssbh_dim_changer_one_two(x)
    y = jax.block_until_ready(y)

    # Reference: swap the first two axes.
    ref = jnp.swapaxes(x, 0, 1)
    assert y.shape == ref.shape, (y.shape, ref.shape)
    assert y.dtype == x.dtype
    assert bool(jnp.array_equal(y, ref))

    print("KERNEL_OK")
</pallas_src>

<mosaic_0001>
module attributes {stable_mosaic.version = 11 : i64} {
  func.func @_swap01_copy_kernel(%arg0: i32, %arg1: i32, %arg2: memref<2x1x8x128xf32, #tpu.memory_space<vmem>>, %arg3: memref<1x2x8x128xf32, #tpu.memory_space<vmem>>) attributes {dimension_semantics = [#tpu.dimension_semantics<parallel>, #tpu.dimension_semantics<parallel>], iteration_bounds = array<i64: 2, 1>, scalar_prefetch = 0 : i64, scratch_operands = 0 : i64, tpu.core_type = #tpu.core_type<tc>, window_params = [{transform_indices = @transform_0, window_bounds = array<i64: 2, 1, 8, 128>}, {transform_indices = @transform_1, window_bounds = array<i64: 1, 2, 8, 128>}]} {
    %c0 = arith.constant 0 : index
    %c0_0 = arith.constant 0 : index
    %c0_1 = arith.constant 0 : index
    %c0_2 = arith.constant 0 : index
    %0 = vector.load %arg2[%c0, %c0_0, %c0_1, %c0_2] : memref<2x1x8x128xf32, #tpu.memory_space<vmem>>, vector<2x1x8x128xf32>
    %1 = vector.shape_cast %0 : vector<2x1x8x128xf32> to vector<2x8x128xf32>
    %c0_3 = arith.constant 0 : index
    %c0_4 = arith.constant 0 : index
    %c0_5 = arith.constant 0 : index
    %c0_6 = arith.constant 0 : index
    %2 = vector.load %arg3[%c0_3, %c0_4, %c0_5, %c0_6] : memref<1x2x8x128xf32, #tpu.memory_space<vmem>>, vector<1x2x8x128xf32>
    %3 = vector.shape_cast %2 : vector<1x2x8x128xf32> to vector<2x8x128xf32>
    %4 = vector.shape_cast %1 : vector<2x8x128xf32> to vector<1x2x8x128xf32>
    tpu.vector_store %arg3[%c0_3, %c0_4, %c0_5, %c0_6], %4 {strides = array<i32>} : memref<1x2x8x128xf32, #tpu.memory_space<vmem>>, vector<1x2x8x128xf32>,
    return
  }
  func.func @transform_0(%arg0: i32, %arg1: i32) -> (i32, i32, i32, i32) {
    %c0_i32 = arith.constant 0 : i32
    %c0_i32_0 = arith.constant 0 : i32
    %c0_i32_1 = arith.constant 0 : i32
    return %c0_i32, %arg0, %arg1, %c0_i32_0 : i32, i32, i32, i32
  }
  func.func @transform_1(%arg0: i32, %arg1: i32) -> (i32, i32, i32, i32) {
    %c0_i32 = arith.constant 0 : i32
    %c0_i32_0 = arith.constant 0 : i32
    %c0_i32_1 = arith.constant 0 : i32
    return %arg0, %c0_i32, %arg1, %c0_i32_0 : i32, i32, i32, i32
  }
}

</mosaic_0001>

<llo_original>
// kernel: tpu_custom_call.1
$region0: #{tpu_custom_call.1}
  #allocation0 [shape = 'u32[]', space=smem, size = 0x4, offset = 0x4, fixed_abs, tag = 'smem constant byte address 0x4 - core index']
  #allocation1 [shape = 'u32[144,128]{1,0:T(1,128)}', space=vmem, size = 0x12000, scoped, tag = 'internal scratch']
  %s0 = inlined_call_operand.hbm [shape: f32[2,2,8,128], index: 0, kind: input, shape index: {}]
  %s1 = inlined_call_operand.hbm [shape: f32[2,2,8,128], index: 1, kind: output, shape index: {}]
  %s2 = sld [smem:[#allocation0]]
  $region41: #{tpu_custom_call.1} parent=0
    _
  %s4 = ssub.s32 1, %s2
  %s5 = scalar_select 0, %s4, %s2
  $region1: #{tpu_custom_call.1} parent=0
    #allocation2 [shape = 'u8[16384]{0}', space=vmem, size = 0x4000, scoped, tag = 'input window, operand 0']
    #allocation3 [shape = 's32[2]{0}', space=sflag, size = 0x8, scoped, tag = 'scoped memory for tpu_custom_call.1']
    #allocation4 [shape = 's32[2]{0}', space=sflag, size = 0x8, scoped, tag = 'scoped memory for tpu_custom_call.1']
    #allocation5 [shape = 'u8[16384]{0}', space=vmem, size = 0x4000, scoped, tag = 'output window, operand 0']
    %6 = vsyncpa [#allocation3], 0
    %s7 = scalar_lea.sflag [#allocation3], 1
    %8 = vsyncpa %s7, 0
    %9 = vsyncpa [#allocation4], 0
    %s10 = scalar_lea.sflag [#allocation4], 1
    %11 = vsyncpa %s10, 0
    loop: start=0, step=1, limit=4
    $region2: #{tpu_custom_call.1} parent=1 // loop_pre_header
      _
    $region3: #{tpu_custom_call.1} parent=1 // loop_header
      %s13 = sphi 0, %s17
      %p14 = scmp.ge.s32.totalorder %s13, 4
      %s20 = sphi 0, %s32
      %s21 = sphi 0, %s28
      %s22 = sphi 0, %s20
      %s23 = sphi 0, %s21
      %s24 = sphi 0, %s22
      %s25 = sphi 0, %s23
      %s37 = sphi 0, %s39
      %s40 = sphi 0, %s37
      %s41 = sphi 0, %s40
      %s57 = sphi 0, %s41
      %s65 = sphi 0, %s67
      %s68 = sphi 0, %s65
      %s69 = sphi 0, %s68
      %s85 = sphi 0, %s69
    $region4: #{tpu_custom_call.1} parent=1 // loop_header_branch
      %16 = sbr.rel (%p14) target = $region8
    $region5: #{tpu_custom_call.1} parent=1 // loop_body
      %s18 = ssub.s32 %s13, 1
      %s19 = ssub.s32 %s13, 2
      %s26 = sadd.s32 1, %s21
      %p27 = scmp.ge.s32.totalorder %s26, 1
      %s28 = scalar_select %p27, 0, %s26
      %s29 = sadd.s32 1, %s20
      %s30 = scalar_select %p27, %s29, %s20
      %p31 = scmp.ge.s32.totalorder %s30, 2
      %s32 = scalar_select %p31, 0, %s30
      %s33 = ssub.s32 %s20, %s32
      %s34 = ssub.s32 %s21, %s28
      %s35 = sor.u32 %s33, %s34
      %p36 = scmp.eq.s32.totalorder %s35, 0
      %s38 = sadd.s32 %s37, 1
      %s39 = scalar_select %p36, %s37, %s38
      %p42 = pneg %p36
      %p43 = scmp.eq.s32.totalorder %s13, 1
      %p44 = por %p42, %p43
      %p45 = scmp.ne.s32.totalorder %s37, %s40
      %p46 = scmp.eq.s32.totalorder %s13, 0
      %p47 = por %p45, %p46
      %p48 = scmp.ne.s32.totalorder %s37, %s40
      %p49 = scmp.eq.s32.totalorder %s18, 1
      %p50 = por %p48, %p49
      %p51 = scmp.ne.s32.totalorder %s40, %s41
      %p52 = scmp.eq.s32.totalorder %s18, 0
      %p53 = por %p51, %p52
      %p54 = scmp.ne.s32.totalorder %s40, %s41
      %p55 = scmp.eq.s32.totalorder %s19, 1
      %p56 = por %p54, %p55
      %p58 = scmp.ne.s32.totalorder %s41, %s57
      %p59 = scmp.eq.s32.totalorder %s19, 0
      %p60 = por %p58, %p59
      %s61 = ssub.s32 %s20, %s32
      %s62 = ssub.s32 %s21, %s28
      %s63 = sor.u32 %s61, %s62
      %p64 = scmp.eq.s32.totalorder %s63, 0
      %s66 = sadd.s32 %s65, 1
      %s67 = scalar_select %p64, %s65, %s66
      %p70 = pneg %p64
      %p71 = scmp.eq.s32.totalorder %s13, 1
      %p72 = por %p70, %p71
      %p73 = scmp.ne.s32.totalorder %s65, %s68
      %p74 = scmp.eq.s32.totalorder %s13, 0
      %p75 = por %p73, %p74
      %p76 = scmp.ne.s32.totalorder %s65, %s68
      %p77 = scmp.eq.s32.totalorder %s18, 1
      %p78 = por %p76, %p77
      %p79 = scmp.ne.s32.totalorder %s68, %s69
      %p80 = scmp.eq.s32.totalorder %s18, 0
      %p81 = por %p79, %p80
      %p82 = scmp.ne.s32.totalorder %s68, %s69
      %p83 = scmp.eq.s32.totalorder %s19, 1
      %p84 = por %p82, %p83
      %p86 = scmp.ne.s32.totalorder %s69, %s85
      %p87 = scmp.eq.s32.totalorder %s19, 0
      %p88 = por %p86, %p87
      %p89 = scmp.le.s32.totalorder 1, %s13
      %p90 = scmp.lt.s32.totalorder %s13, 3
      %p91 = pnand %p89, %p90
      %p92 = pneg %p91
      // Predicated region
      $region9: #{tpu_custom_call.1} parent=5 // pred_check
        _
      $region10: #{tpu_custom_call.1} parent=5 // pred_check_branch
        %94 = sbr.rel (%p91) target = $region12
      $region11: #{tpu_custom_call.1} parent=5 // pred_region
        %s95 = ssub.s32 %s13, 1
      $region12: #{tpu_custom_call.1} parent=5 // pred_fallthru
        _
      %p96 = scmp.lt.s32.totalorder %s13, 2
      // Predicated region
      $region13: #{tpu_custom_call.1} parent=5 // pred_check
        %p97 = pneg %p96
      $region14: #{tpu_custom_call.1} parent=5 // pred_check_branch
        %99 = sbr.rel (%p97) target = $region16
      $region15: #{tpu_custom_call.1} parent=5 // pred_region
        // Predicated region
        $region17: #{tpu_custom_call.1} parent=15 // pred_check
          %p100 = pneg %p47
        $region18: #{tpu_custom_call.1} parent=15 // pred_check_branch
          %102 = sbr.rel (%p100) target = $region20
        $region19: #{tpu_custom_call.1} parent=15 // pred_region
          %s103 = sand.u32 %s37, 1
          %s104 = scalar_lea.sflag [#allocation3], %s103
          %s105 = sand.u32 %s37, 1
          %s106 = smul.addr %s105, 16
          %s107 = scalar_lea.vmem [#allocation2], %s106
          %s109 = ssub.s32 256, 256
          %110 = vsyncadd %s104, %s109
          %s111 = sadd.s32 %s21, %s20
          %s112 = smul.addr %s111, 128
          %s113 = scalar_lea.hbm %s0, %s112
          %s114 = sshll.u32 %s107, 4
          %s115 = int_to_ptr.vmem [resolvable:$true] %s114
          %120 = dma.hbm_to_vmem [thread:$0]  %s113, 256, %s115, %s104, 256, 128, 8
        $region20: #{tpu_custom_call.1} parent=15 // pred_fallthru
          _
      $region16: #{tpu_custom_call.1} parent=5 // pred_fallthru
        _
      %p121 = scmp.le.s32.totalorder 1, %s13
      %p122 = scmp.lt.s32.totalorder %s13, 3
      %p123 = pnand %p121, %p122
      %p124 = pneg %p123
      // Predicated region
      $region21: #{tpu_custom_call.1} parent=5 // pred_check
        _
      $region22: #{tpu_custom_call.1} parent=5 // pred_check_branch
        %126 = sbr.rel (%p123) target = $region24
      $region23: #{tpu_custom_call.1} parent=5 // pred_region
        %s127 = ssub.s32 %s13, 1
        %s128 = sand.u32 %s40, 1
        %s129 = scalar_lea.sflag [#allocation3], %s128
        %s130 = sand.u32 %s40, 1
        %s131 = smul.addr %s130, 16
        %s132 = scalar_lea.vmem [#allocation2], %s131
        // Predicated region
        $region25: #{tpu_custom_call.1} parent=23 // pred_check
          %p133 = pneg %p53
        $region26: #{tpu_custom_call.1} parent=23 // pred_check_branch
          %135 = sbr.rel (%p133) target = $region28
        $region27: #{tpu_custom_call.1} parent=23 // pred_region
          %136 = dma.done %s129, 256
        $region28: #{tpu_custom_call.1} parent=23 // pred_fallthru
          _
        %s137 = sand.u32 %s40, 1
        %s138 = scalar_lea.sflag [#allocation3], %s137
        %s139 = sand.u32 %s40, 1
        %s140 = smul.addr %s139, 16
        %s141 = scalar_lea.vmem [#allocation2], %s140
        %p142 = pneg %p53
        %p143 = pneg %p50
        %p144 = pneg %p81
        %p145 = pneg %p78
        %s146 = sand.u32 %s68, 1
        %s147 = scalar_lea.sflag [#allocation4], %s146
        %s148 = sand.u32 %s68, 1
        %s149 = smul.addr %s148, 16
        %s150 = scalar_lea.vmem [#allocation5], %s149
        %v151 = vld [vmem:[%s132] sm:$0xff]
        %v152 = vld [vmem:[%s132 + $0x8] sm:$0xff]
        %153 = vst [vmem:[%s150] sm:$0xff] %v151
        %154 = vst [vmem:[%s150 + $0x8] sm:$0xff] %v152
        %s155 = sand.u32 %s68, 1
        %s156 = scalar_lea.sflag [#allocation4], %s155
        %s157 = sand.u32 %s68, 1
        %s158 = smul.addr %s157, 16
        %s159 = scalar_lea.vmem [#allocation5], %s158
        // Predicated region
        $region29: #{tpu_custom_call.1} parent=23 // pred_check
          %p160 = pneg %p78
        $region30: #{tpu_custom_call.1} parent=23 // pred_check_branch
          %162 = sbr.rel (%p160) target = $region32
        $region31: #{tpu_custom_call.1} parent=23 // pred_region
          %s164 = ssub.s32 256, 256
          %165 = vsyncadd %s156, %s164
          %s166 = smul.addr %s22, 2
          %s167 = sadd.s32 %s23, %s166
          %s168 = smul.addr %s167, 128
          %s169 = scalar_lea.hbm %s1, %s168
          %s170 = sshll.u32 %s159, 4
          %s171 = int_to_ptr.vmem [resolvable:$true] %s170
          %176 = dma.vmem_to_hbm [thread:$0]  %s171, 256, %s169, %s156, 128, 128, 8
        $region32: #{tpu_custom_call.1} parent=23 // pred_fallthru
          _
      $region24: #{tpu_custom_call.1} parent=5 // pred_fallthru
        _
      %p177 = scmp.le.s32.totalorder 2, %s13
      // Predicated region
      $region33: #{tpu_custom_call.1} parent=5 // pred_check
        %p178 = pneg %p177
      $region34: #{tpu_custom_call.1} parent=5 // pred_check_branch
        %180 = sbr.rel (%p178) target = $region36
      $region35: #{tpu_custom_call.1} parent=5 // pred_region
        %s181 = ssub.s32 %s13, 2
        // Predicated region
        $region37: #{tpu_custom_call.1} parent=35 // pred_check
          %p182 = pneg %p84
        $region38: #{tpu_custom_call.1} parent=35 // pred_check_branch
          %184 = sbr.rel (%p182) target = $region40
        $region39: #{tpu_custom_call.1} parent=35 // pred_region
          %s185 = sand.u32 %s69, 1
          %s186 = scalar_lea.sflag [#allocation4], %s185
          %s187 = sand.u32 %s69, 1
          %s188 = smul.addr %s187, 16
          %s189 = scalar_lea.vmem [#allocation5], %s188
          %190 = dma.done %s186, 256
        $region40: #{tpu_custom_call.1} parent=35 // pred_fallthru
          _
      $region36: #{tpu_custom_call.1} parent=5 // pred_fallthru
        _
    $region6: #{tpu_custom_call.1} parent=1 // loop_footer
      %s17 = sadd.s32 1, %s13
    $region7: #{tpu_custom_call.1} parent=1 // loop_footer_branch
      %12 = sbr.rel target = $region3
    $region8: #{tpu_custom_call.1} parent=1 // loop_exit
      _
    %191 = vsyncpa [#allocation3], 1
    %s192 = scalar_lea.sflag [#allocation3], 1
    %193 = vsyncpa %s192, 1
    %194 = vsyncpa [#allocation4], 1
    %s195 = scalar_lea.sflag [#allocation4], 1
    %196 = vsyncpa %s195, 1

</llo_original>
